<compile_context>
chip_gen: v5e
topology: v5e:2x2
jax: 0.10.0
libtpu: 0.0.40
codegen_flags: <defaults>
</compile_context>

<pallas_src>
import functools

import jax
import jax.numpy as jnp
import numpy as np
from jax.experimental import pallas as pl
from jax.experimental.pallas import tpu as pltpu


_PER_TAP_MIN_ROWS = 256   # use per-tap accumulation (no im2col slab) above this [R3]


def _round_up(n, m):
    return -(-n // m) * m


# ------------------------------- fused kernel -------------------------------- #

def _fused_model_kernel(x_ref, shifts_ref, we_ref, *rest,
                        filter_widths, widths, per_tap_min_rows):
    """Whole-model forward on the batch-folded (channels, W) layout.

    rest = ([w0_i, w1_i] * n_layers, w_shrink, b_shrink, out, slab_scratch)
    Layout: channels on sublanes, (batch-folded) time on lanes.
    """
    n_layers = len(filter_widths) - 1
    layer_refs = rest[:2 * n_layers]
    ws_ref = rest[2 * n_layers]
    sb_ref = rest[2 * n_layers + 1]
    o_ref = rest[2 * n_layers + 2]
    slab_ref = rest[2 * n_layers + 3]            # bf16 im2col scratch [R2]

    channels = we_ref.shape[0]
    c_in_pad = x_ref.shape[0]

    shifts = shifts_ref[...]                     # (channels, n_bn) f32, loaded once

    def shift(j):                                # BN shift column (scale folded) [R1]
        return shifts[:, j:j + 1]

    def conv(h, w_ref_, c_rows, kw, dil, t_comp):
        """Dilated Conv1d (BN scale pre-folded) as MXU contraction(s)."""
        if c_rows >= per_tap_min_rows:
            # [R3] per-tap accumulation: K is already large, skip the slab round-trip.
            acc = jnp.dot(w_ref_[:, :c_rows],
                          h[:, :t_comp].astype(jnp.bfloat16),
                          preferred_element_type=jnp.float32)
            for k in range(1, kw):
                acc = acc + jnp.dot(
                    w_ref_[:, k * c_rows:(k + 1) * c_rows],
                    h[:, k * dil:k * dil + t_comp].astype(jnp.bfloat16),
                    preferred_element_type=jnp.float32)
            return acc
        # small-channel path: stack the taps into one bf16 im2col slab -> single dot.
        for k in range(kw):                      # static unroll; lane-dense stores [R7]
            slab_ref[k * c_rows:(k + 1) * c_rows, :t_comp] = (
                h[:, k * dil:k * dil + t_comp].astype(jnp.bfloat16))
        return jnp.dot(w_ref_[...], slab_ref[:kw * c_rows, :t_comp],
                       preferred_element_type=jnp.float32)

    x = x_ref[...]                               # bf16 (c_in_pad, W_in) [R8]

    # expand conv + BN(shift only) + ReLU   (Dropout = identity in eval mode)
    h = jnp.maximum(conv(x, we_ref, c_in_pad, filter_widths[0], 1, widths[0])
                    + shift(0), 0.0)             # f32 (channels, widths[0])

    dil = filter_widths[0]
    for i in range(n_layers):                    # static Python loop over blocks
        kw = filter_widths[i + 1]
        pad = (kw - 1) * dil // 2
        t_comp = widths[i + 1]
        res = h[:, pad:pad + t_comp]             # residual crop (f32, in-register)

        h1 = jnp.maximum(conv(h, layer_refs[2 * i], channels, kw, dil, t_comp)
                         + shift(1 + 2 * i), 0.0)
        y = jnp.dot(layer_refs[2 * i + 1][...], h1.astype(jnp.bfloat16),
                    preferred_element_type=jnp.float32)
        h = res + jnp.maximum(y + shift(2 + 2 * i), 0.0)
        dil *= kw

    # shrink head: 1x1 conv with bias (out_dim padded to 64 -> unmasked store) [R10]
    out = jnp.dot(ws_ref[...], h.astype(jnp.bfloat16),
                  preferred_element_type=jnp.float32) + sb_ref[...]
    o_ref[...] = out


# ------------------------------ host-side geometry ----------------------------- #

def _geometry(B, T, filter_widths):
    """Lane-dense width plan: every computed width is a multiple of 128 [R6][R7]."""
    shrinks = [filter_widths[0] - 1]
    d = filter_widths[0]
    for i in range(1, len(filter_widths)):
        shrinks.append((filter_widths[i] - 1) * d)
        d *= filter_widths[i]
    total_shrink = sum(shrinks)
    t_out = T - total_shrink
    assert t_out > 0, "clip too short for this filter_widths configuration"

    t_chunk = _round_up(T, 128)                  # per-batch chunk stride on the lane axis
    # per-conv computed output widths, derived backward from the final output width
    w = _round_up((B - 1) * t_chunk + t_out, 128)
    rev = [w]                                    # [Wb_L, ..., Wb_1, We]
    for s in reversed(shrinks[1:]):
        w = _round_up(w + s, 128)
        rev.append(w)
    widths = tuple(reversed(rev))                # (We, Wb_1, ..., Wb_L)
    w_in = _round_up(widths[0] + shrinks[0], 128)
    return dict(B=B, T=T, t_out=t_out, t_chunk=t_chunk, widths=widths, w_in=w_in)


def _pack_params(params, c_in_pad, out_dim_pad):
    """Fold taps AND BN scale into (c_out, kw*c_in) bf16 matrices [R1]; pack shifts."""
    channels = params["expand_w"].shape[1]
    assert channels % 16 == 0, "channels must be a multiple of 16 for the bf16 slab"

    def fold(w, scale, pad_to=None):
        kw, _, ci = w.shape
        if pad_to is not None and pad_to > ci:
            w = jnp.pad(w, ((0, 0), (0, 0), (0, pad_to - ci)))
        w = w * scale[None]                      # fold BN scale in f32, per output row
        return jnp.concatenate([w[k] for k in range(kw)], axis=1).astype(jnp.bfloat16)

    shift_cols = [params["expand_shift"]]
    layer_ws = []
    for p in params["layers"]:
        layer_ws.append(fold(p["w0"], p["scale0"]))
        layer_ws.append((p["w1"][0] * p["scale1"]).astype(jnp.bfloat16))
        shift_cols += [p["shift0"], p["shift1"]]

    out_dim = params["shrink_w"].shape[1]
    ws = jnp.pad(params["shrink_w"][0], ((0, out_dim_pad - out_dim), (0, 0)))
    sb = jnp.pad(params["shrink_b"], ((0, out_dim_pad - out_dim), (0, 0)))

    return dict(
        we=fold(params["expand_w"], params["expand_scale"], pad_to=c_in_pad),
        layer_ws=tuple(layer_ws),
        ws=ws.astype(jnp.bfloat16),
        sb=sb.astype(jnp.float32),
        shifts=jnp.concatenate(shift_cols, axis=1).astype(jnp.float32),
        out_dim=out_dim,
    )


def _build_inputs(params, pos_3d, pos_2d, bone_angle, filter_widths):
    B, T = pos_3d.shape[:2]
    x = jnp.concatenate(
        [pos_3d.reshape(B, T, -1), pos_2d.reshape(B, T, -1), bone_angle.reshape(B, T, -1)],
        axis=-1)
    x = jnp.transpose(x, (0, 2, 1)).astype(jnp.float32)           # (B, c_in, T)
    c_in = x.shape[1]
    c_in_pad = _round_up(c_in, 16)                                 # bf16 sublane packing [R2]
    geom = _geometry(B, T, filter_widths)

    # batch folded into the lane axis: chunk b lives at columns [b*t_chunk, b*t_chunk+T)
    x = jnp.pad(x, ((0, 0), (0, c_in_pad - c_in), (0, geom["t_chunk"] - T)))
    x = jnp.transpose(x, (1, 0, 2)).reshape(c_in_pad, B * geom["t_chunk"])
    x_slab = jnp.pad(x, ((0, 0), (0, geom["w_in"] - B * geom["t_chunk"])))
    x_slab = x_slab.astype(jnp.bfloat16)                           # [R8]

    out_dim = params["shrink_w"].shape[1]
    out_dim_pad = _round_up(out_dim, 16)                           # 51 -> 64 [R10]
    packed = _pack_params(params, c_in_pad, out_dim_pad)
    return x_slab, packed, geom


# ------------------------------- pallas wrapper ------------------------------- #

def fused_temporal_forward(x_slab, packed, filter_widths, widths):
    c_in_pad, w_in = x_slab.shape
    channels = packed["we"].shape[0]
    out_dim_pad = packed["ws"].shape[0]
    n_layers = len(filter_widths) - 1
    w_out = widths[-1]

    # size the bf16 slab scratch only over convs that actually take the slab path [R2][R3]
    conv_geoms = [(filter_widths[0], c_in_pad, widths[0])]
    conv_geoms += [(filter_widths[i + 1], channels, widths[i + 1]) for i in range(n_layers)]
    slab_rows, slab_cols = 16, 128
    for kw, c_rows, t_comp in conv_geoms:
        if c_rows < _PER_TAP_MIN_ROWS:
            slab_rows = max(slab_rows, kw * c_rows)
            slab_cols = max(slab_cols, t_comp)

    kernel = functools.partial(
        _fused_model_kernel,
        filter_widths=tuple(filter_widths),
        widths=tuple(widths),
        per_tap_min_rows=_PER_TAP_MIN_ROWS)

    const = lambda i: (0, 0)
    in_specs = [pl.BlockSpec(x_slab.shape, const),
                pl.BlockSpec(packed["shifts"].shape, const),
                pl.BlockSpec(packed["we"].shape, const)]
    in_specs += [pl.BlockSpec(w.shape, const) for w in packed["layer_ws"]]
    in_specs += [pl.BlockSpec(packed["ws"].shape, const),
                 pl.BlockSpec(packed["sb"].shape, const)]
    # TODO(synk): at production scale mark the weight/shift specs pipeline_mode=pl.Buffered(1)
    # (or move them to pl.ANY + one-time DMA) so they are not double-buffered in VMEM.

    return pl.pallas_call(
        kernel,
        out_shape=jax.ShapeDtypeStruct((out_dim_pad, w_out), jnp.float32),
        grid=(1,),                                 # batch folded into lanes [R6]
        in_specs=in_specs,
        out_specs=pl.BlockSpec((out_dim_pad, w_out), const),
        scratch_shapes=[pltpu.VMEM((slab_rows, slab_cols), jnp.bfloat16)],
        compiler_params=pltpu.CompilerParams(
            dimension_semantics=("arbitrary",),
            vmem_limit_bytes=32 * 1024 * 1024),    # explicit budget [R4]
    )(x_slab, packed["shifts"], packed["we"], *packed["layer_ws"],
      packed["ws"], packed["sb"])


def _extract_output(out_slab, B, t_chunk, t_out, out_dim):
    """Slice the true per-batch frames out of the batch-folded lane-dense output."""
    chunks = [out_slab[:out_dim, b * t_chunk: b * t_chunk + t_out] for b in range(B)]
    out = jnp.stack(chunks, axis=0)                               # (B, 51, t_out)
    out = out.reshape(B, 17, 3, t_out)
    return jnp.transpose(out, (0, 3, 1, 2))                       # (B, t_out, 17, 3)


def my_video_test_model(params, pos_3d, pos_2d, bone_angle, filter_widths):
    """Pallas-backed forward pass of MyVideoTestModel (inference mode)."""
    x_slab, packed, geom = _build_inputs(params, pos_3d, pos_2d, bone_angle, filter_widths)
    out_slab = fused_temporal_forward(x_slab, packed, filter_widths, geom["widths"])
    return _extract_output(out_slab, geom["B"], geom["t_chunk"], geom["t_out"],
                           packed["out_dim"])


# ------------------------------ parameter init -------------------------------- #

def init_params(key, *, in_channels=34, channels=32, filter_widths=(3, 3), out_dim=17 * 3):
    keys = list(jax.random.split(key, 64))
    ki = iter(keys)

    def bn_params(k, c):
        k1, k2, k3, k4 = jax.random.split(k, 4)
        gamma = 1.0 + 0.1 * jax.random.normal(k1, (c, 1), jnp.float32)
        beta = 0.1 * jax.random.normal(k2, (c, 1), jnp.float32)
        mean = 0.1 * jax.random.normal(k3, (c, 1), jnp.float32)
        var = 1.0 + 0.1 * jax.random.uniform(k4, (c, 1), jnp.float32)
        eps = 1e-5
        scale = gamma / jnp.sqrt(var + eps)
        shift = beta - mean * scale
        return scale, shift

    params = {}
    params["expand_w"] = 0.1 * jax.random.normal(
        next(ki), (filter_widths[0], channels, in_channels), jnp.float32)
    params["expand_scale"], params["expand_shift"] = bn_params(next(ki), channels)

    layers = []
    for i in range(1, len(filter_widths)):
        w0 = 0.1 * jax.random.normal(next(ki), (filter_widths[i], channels, channels), jnp.float32)
        s0, sh0 = bn_params(next(ki), channels)
        w1 = 0.1 * jax.random.normal(next(ki), (1, channels, channels), jnp.float32)
        s1, sh1 = bn_params(next(ki), channels)
        layers.append(dict(w0=w0, scale0=s0, shift0=sh0, w1=w1, scale1=s1, shift1=sh1))
    params["layers"] = layers

    params["shrink_w"] = 0.1 * jax.random.normal(next(ki), (1, out_dim, channels), jnp.float32)
    params["shrink_b"] = 0.1 * jax.random.normal(next(ki), (out_dim, 1), jnp.float32)
    return params


# ------------------------------ pure-JAX references ---------------------------- #

def _reference_forward_f32(params, pos_3d, pos_2d, bone_angle, filter_widths):
    """Faithful f32 translation of the PyTorch module (eval mode)."""
    B, T = pos_3d.shape[:2]
    x = jnp.concatenate(
        [pos_3d.reshape(B, T, -1), pos_2d.reshape(B, T, -1), bone_angle.reshape(B, T, -1)],
        axis=-1)
    x = jnp.transpose(x, (0, 2, 1))

    def conv(x, w, d):
        kw = w.shape[0]
        t_out = x.shape[-1] - (kw - 1) * d
        return sum(jnp.einsum("oc,bct->bot", w[k], x[:, :, k * d: k * d + t_out])
                   for k in range(kw))

    x = jnp.maximum(conv(x, params["expand_w"], 1) * params["expand_scale"][None]
                    + params["expand_shift"][None], 0.0)
    nd = filter_widths[0]
    for i in range(1, len(filter_widths)):
        p = params["layers"][i - 1]
        pad = (filter_widths[i] - 1) * nd // 2
        res = x[:, :, pad: x.shape[2] - pad]
        x = jnp.maximum(conv(x, p["w0"], nd) * p["scale0"][None] + p["shift0"][None], 0.0)
        x = res + jnp.maximum(conv(x, p["w1"], 1) * p["scale1"][None] + p["shift1"][None], 0.0)
        nd *= filter_widths[i]
    out = conv(x, params["shrink_w"], 1) + params["shrink_b"][None]
    Bo, _, To = out.shape
    return jnp.transpose(out.reshape(Bo, 17, 3, To), (0, 3, 1, 2))


def _reference_forward_packed(x_slab, packed, filter_widths, widths):
    """Plain-JAX mirror of the fused kernel math (same folded weights / bf16 cast points)."""
    shifts = packed["shifts"]

    def sh(j):
        return shifts[:, j:j + 1]

    def conv(h, wf, kw, dil, t_comp):
        slab = jnp.concatenate(
            [h[:, k * dil:k * dil + t_comp].astype(jnp.bfloat16) for k in range(kw)], axis=0)
        return jnp.dot(wf, slab, preferred_element_type=jnp.float32)

    h = jnp.maximum(conv(x_slab, packed["we"], filter_widths[0], 1, widths[0]) + sh(0), 0.0)
    dil = filter_widths[0]
    for i in range(len(filter_widths) - 1):
        kw = filter_widths[i + 1]
        pad = (kw - 1) * dil // 2
        t_comp = widths[i + 1]
        res = h[:, pad:pad + t_comp]
        h1 = jnp.maximum(conv(h, packed["layer_ws"][2 * i], kw, dil, t_comp)
                         + sh(1 + 2 * i), 0.0)
        y = jnp.dot(packed["layer_ws"][2 * i + 1], h1.astype(jnp.bfloat16),
                    preferred_element_type=jnp.float32)
        h = res + jnp.maximum(y + sh(2 + 2 * i), 0.0)
        dil *= kw
    return jnp.dot(packed["ws"], h.astype(jnp.bfloat16),
                   preferred_element_type=jnp.float32) + packed["sb"]


# ----------------------------------- main ------------------------------------- #

if __name__ == "__main__":
    filter_widths = (3, 3)
    channels = 32           # small stand-in for the default 1024
    B, T = 2, 27

    key = jax.random.PRNGKey(0)
    k1, k2, k3, kp = jax.random.split(key, 4)
    # feature dims must sum to in_channels = 17*2 = 34 (fixed by the module):
    pos_3d = jax.random.normal(k1, (B, T, 4, 3), jnp.float32)      # 12 feats
    pos_2d = jax.random.normal(k2, (B, T, 8, 2), jnp.float32)      # 16 feats
    bone_angle = jax.random.normal(k3, (B, T, 3, 2), jnp.float32)  # 6 feats

    params = init_params(kp, in_channels=34, channels=channels,
                         filter_widths=filter_widths)

    out = my_video_test_model(params, pos_3d, pos_2d, bone_angle, filter_widths)
    out = jax.block_until_ready(out)
    assert out.shape == (B, 19, 17, 3), out.shape

    # tight check vs a plain-JAX mirror of the kernel math (same folded bf16 weights)
    x_slab, packed, geom = _build_inputs(params, pos_3d, pos_2d, bone_angle, filter_widths)
    ref_slab = _reference_forward_packed(x_slab, packed, filter_widths, geom["widths"])
    ref_bf16 = _extract_output(ref_slab, B, geom["t_chunk"], geom["t_out"], packed["out_dim"])
    np.testing.assert_allclose(np.asarray(out), np.asarray(ref_bf16), rtol=2e-3, atol=2e-3)

    # semantic check vs the faithful f32 reference (loose tol for bf16 MXU inputs)
    ref_f32 = _reference_forward_f32(params, pos_3d, pos_2d, bone_angle, filter_widths)
    np.testing.assert_allclose(np.asarray(out), np.asarray(ref_f32), rtol=5e-2, atol=5e-2)

    print("KERNEL_OK")
</pallas_src>

<mosaic_0001>
module attributes {stable_mosaic.version = 11 : i64} {
  func.func @_fused_model_kernel(%arg0: i32, %arg1: memref<48x512xbf16, #tpu.memory_space<vmem>>, %arg2: memref<32x3xf32, #tpu.memory_space<vmem>>, %arg3: memref<32x144xbf16, #tpu.memory_space<vmem>>, %arg4: memref<32x96xbf16, #tpu.memory_space<vmem>>, %arg5: memref<32x32xbf16, #tpu.memory_space<vmem>>, %arg6: memref<64x32xbf16, #tpu.memory_space<vmem>>, %arg7: memref<64x1xf32, #tpu.memory_space<vmem>>, %arg8: memref<64x256xf32, #tpu.memory_space<vmem>>, %arg9: memref<144x384xbf16, #tpu.memory_space<vmem>>) attributes {dimension_semantics = [#tpu.dimension_semantics<arbitrary>], iteration_bounds = array<i64: 1>, scalar_prefetch = 0 : i64, scratch_operands = 1 : i64, tpu.core_type = #tpu.core_type<tc>, window_params = [{pipeline_mode = #tpu.pipeline_mode<synchronous>, transform_indices = @transform_0, window_bounds = array<i64: 48, 512>}, {pipeline_mode = #tpu.pipeline_mode<synchronous>, transform_indices = @transform_1, window_bounds = array<i64: 32, 3>}, {pipeline_mode = #tpu.pipeline_mode<synchronous>, transform_indices = @transform_2, window_bounds = array<i64: 32, 144>}, {pipeline_mode = #tpu.pipeline_mode<synchronous>, transform_indices = @transform_3, window_bounds = array<i64: 32, 96>}, {pipeline_mode = #tpu.pipeline_mode<synchronous>, transform_indices = @transform_4, window_bounds = array<i64: 32, 32>}, {pipeline_mode = #tpu.pipeline_mode<synchronous>, transform_indices = @transform_5, window_bounds = array<i64: 64, 32>}, {pipeline_mode = #tpu.pipeline_mode<synchronous>, transform_indices = @transform_6, window_bounds = array<i64: 64, 1>}, {pipeline_mode = #tpu.pipeline_mode<synchronous>, transform_indices = @transform_7, window_bounds = array<i64: 64, 256>}]} {
    %c0 = arith.constant 0 : index
    %c0_0 = arith.constant 0 : index
    %0 = vector.load %arg2[%c0, %c0_0] : memref<32x3xf32, #tpu.memory_space<vmem>>, vector<32x3xf32>
    %c0_1 = arith.constant 0 : index
    %c0_2 = arith.constant 0 : index
    %1 = vector.load %arg1[%c0_1, %c0_2] : memref<48x512xbf16, #tpu.memory_space<vmem>>, vector<48x512xbf16>
    %2 = vector.extract_strided_slice %1 {offsets = [0, 0], sizes = [48, 384], strides = [1, 1]} : vector<48x512xbf16> to vector<48x384xbf16>
    %c0_3 = arith.constant 0 : index
    %c0_4 = arith.constant 0 : index
    %3 = vector.load %arg9[%c0_3, %c0_4] : memref<144x384xbf16, #tpu.memory_space<vmem>>, vector<48x384xbf16>
    tpu.vector_store %arg9[%c0_3, %c0_4], %2 {strides = array<i32>} : memref<144x384xbf16, #tpu.memory_space<vmem>>, vector<48x384xbf16>,
    %4 = vector.extract_strided_slice %1 {offsets = [0, 1], sizes = [48, 384], strides = [1, 1]} : vector<48x512xbf16> to vector<48x384xbf16>
    %c48 = arith.constant 48 : index
    %c0_5 = arith.constant 0 : index
    %5 = vector.load %arg9[%c48, %c0_5] : memref<144x384xbf16, #tpu.memory_space<vmem>>, vector<48x384xbf16>
    tpu.vector_store %arg9[%c48, %c0_5], %4 {strides = array<i32>} : memref<144x384xbf16, #tpu.memory_space<vmem>>, vector<48x384xbf16>,
    %6 = vector.extract_strided_slice %1 {offsets = [0, 2], sizes = [48, 384], strides = [1, 1]} : vector<48x512xbf16> to vector<48x384xbf16>
    %c96 = arith.constant 96 : index
    %c0_6 = arith.constant 0 : index
    %7 = vector.load %arg9[%c96, %c0_6] : memref<144x384xbf16, #tpu.memory_space<vmem>>, vector<48x384xbf16>
    tpu.vector_store %arg9[%c96, %c0_6], %6 {strides = array<i32>} : memref<144x384xbf16, #tpu.memory_space<vmem>>, vector<48x384xbf16>,
    %c0_7 = arith.constant 0 : index
    %c0_8 = arith.constant 0 : index
    %8 = vector.load %arg3[%c0_7, %c0_8] : memref<32x144xbf16, #tpu.memory_space<vmem>>, vector<32x144xbf16>
    %c0_9 = arith.constant 0 : index
    %c0_10 = arith.constant 0 : index
    %9 = vector.load %arg9[%c0_9, %c0_10] : memref<144x384xbf16, #tpu.memory_space<vmem>>, vector<144x384xbf16>
    %cst = arith.constant dense<0.000000e+00> : vector<32x384xf32>
    %10 = tpu.matmul %8, %9, %cst {dimension_numbers = #tpu.dot_dimension_numbers<[1], [0], [0], [1], [0, 0, 1, 1], [], []>} : vector<32x144xbf16>, vector<144x384xbf16>, vector<32x384xf32> -> vector<32x384xf32>
    %11 = vector.extract_strided_slice %0 {offsets = [0, 0], sizes = [32, 1], strides = [1, 1]} : vector<32x3xf32> to vector<32x1xf32>
    %12 = vector.broadcast %11 : vector<32x1xf32> to vector<32x384xf32>
    %13 = arith.addf %10, %12 : vector<32x384xf32>
    %cst_11 = arith.constant 0.000000e+00 : f32
    %14 = vector.broadcast %cst_11 : f32 to vector<32x384xf32>
    %15 = arith.maximumf %13, %14 : vector<32x384xf32>
    %16 = vector.extract_strided_slice %15 {offsets = [0, 3], sizes = [32, 256], strides = [1, 1]} : vector<32x384xf32> to vector<32x256xf32>
    %17 = vector.extract_strided_slice %15 {offsets = [0, 0], sizes = [32, 256], strides = [1, 1]} : vector<32x384xf32> to vector<32x256xf32>
    %18 = arith.truncf %17 : vector<32x256xf32> to vector<32x256xbf16>
    %c0_12 = arith.constant 0 : index
    %c0_13 = arith.constant 0 : index
    %19 = vector.load %arg9[%c0_12, %c0_13] : memref<144x384xbf16, #tpu.memory_space<vmem>>, vector<32x256xbf16>
    tpu.vector_store %arg9[%c0_12, %c0_13], %18 {strides = array<i32>} : memref<144x384xbf16, #tpu.memory_space<vmem>>, vector<32x256xbf16>,
    %20 = vector.extract_strided_slice %15 {offsets = [0, 3], sizes = [32, 256], strides = [1, 1]} : vector<32x384xf32> to vector<32x256xf32>
    %21 = arith.truncf %20 : vector<32x256xf32> to vector<32x256xbf16>
    %c32 = arith.constant 32 : index
    %c0_14 = arith.constant 0 : index
    %22 = vector.load %arg9[%c32, %c0_14] : memref<144x384xbf16, #tpu.memory_space<vmem>>, vector<32x256xbf16>
    tpu.vector_store %arg9[%c32, %c0_14], %21 {strides = array<i32>} : memref<144x384xbf16, #tpu.memory_space<vmem>>, vector<32x256xbf16>,
    %23 = vector.extract_strided_slice %15 {offsets = [0, 6], sizes = [32, 256], strides = [1, 1]} : vector<32x384xf32> to vector<32x256xf32>
    %24 = arith.truncf %23 : vector<32x256xf32> to vector<32x256xbf16>
    %c64 = arith.constant 64 : index
    %c0_15 = arith.constant 0 : index
    %25 = vector.load %arg9[%c64, %c0_15] : memref<144x384xbf16, #tpu.memory_space<vmem>>, vector<32x256xbf16>
    tpu.vector_store %arg9[%c64, %c0_15], %24 {strides = array<i32>} : memref<144x384xbf16, #tpu.memory_space<vmem>>, vector<32x256xbf16>,
    %c0_16 = arith.constant 0 : index
    %c0_17 = arith.constant 0 : index
    %26 = vector.load %arg4[%c0_16, %c0_17] : memref<32x96xbf16, #tpu.memory_space<vmem>>, vector<32x96xbf16>
    %c0_18 = arith.constant 0 : index
    %c0_19 = arith.constant 0 : index
    %27 = vector.load %arg9[%c0_18, %c0_19] : memref<144x384xbf16, #tpu.memory_space<vmem>>, vector<96x256xbf16>
    %cst_20 = arith.constant dense<0.000000e+00> : vector<32x256xf32>
    %28 = tpu.matmul %26, %27, %cst_20 {dimension_numbers = #tpu.dot_dimension_numbers<[1], [0], [0], [1], [0, 0, 1, 1], [], []>} : vector<32x96xbf16>, vector<96x256xbf16>, vector<32x256xf32> -> vector<32x256xf32>
    %29 = vector.extract_strided_slice %0 {offsets = [0, 1], sizes = [32, 1], strides = [1, 1]} : vector<32x3xf32> to vector<32x1xf32>
    %30 = vector.broadcast %29 : vector<32x1xf32> to vector<32x256xf32>
    %31 = arith.addf %28, %30 : vector<32x256xf32>
    %cst_21 = arith.constant 0.000000e+00 : f32
    %32 = vector.broadcast %cst_21 : f32 to vector<32x256xf32>
    %33 = arith.maximumf %31, %32 : vector<32x256xf32>
    %c0_22 = arith.constant 0 : index
    %c0_23 = arith.constant 0 : index
    %34 = vector.load %arg5[%c0_22, %c0_23] : memref<32x32xbf16, #tpu.memory_space<vmem>>, vector<32x32xbf16>
    %35 = arith.truncf %33 : vector<32x256xf32> to vector<32x256xbf16>
    %cst_24 = arith.constant dense<0.000000e+00> : vector<32x256xf32>
    %36 = tpu.matmul %34, %35, %cst_24 {dimension_numbers = #tpu.dot_dimension_numbers<[1], [0], [0], [1], [0, 0, 1, 1], [], []>} : vector<32x32xbf16>, vector<32x256xbf16>, vector<32x256xf32> -> vector<32x256xf32>
    %37 = vector.extract_strided_slice %0 {offsets = [0, 2], sizes = [32, 1], strides = [1, 1]} : vector<32x3xf32> to vector<32x1xf32>
    %38 = vector.broadcast %37 : vector<32x1xf32> to vector<32x256xf32>
    %39 = arith.addf %36, %38 : vector<32x256xf32>
    %cst_25 = arith.constant 0.000000e+00 : f32
    %40 = vector.broadcast %cst_25 : f32 to vector<32x256xf32>
    %41 = arith.maximumf %39, %40 : vector<32x256xf32>
    %42 = arith.addf %16, %41 : vector<32x256xf32>
    %c0_26 = arith.constant 0 : index
    %c0_27 = arith.constant 0 : index
    %43 = vector.load %arg6[%c0_26, %c0_27] : memref<64x32xbf16, #tpu.memory_space<vmem>>, vector<64x32xbf16>
    %44 = arith.truncf %42 : vector<32x256xf32> to vector<32x256xbf16>
    %cst_28 = arith.constant dense<0.000000e+00> : vector<64x256xf32>
    %45 = tpu.matmul %43, %44, %cst_28 {dimension_numbers = #tpu.dot_dimension_numbers<[1], [0], [0], [1], [0, 0, 1, 1], [], []>} : vector<64x32xbf16>, vector<32x256xbf16>, vector<64x256xf32> -> vector<64x256xf32>
    %c0_29 = arith.constant 0 : index
    %c0_30 = arith.constant 0 : index
    %46 = vector.load %arg7[%c0_29, %c0_30] : memref<64x1xf32, #tpu.memory_space<vmem>>, vector<64x1xf32>
    %47 = vector.broadcast %46 : vector<64x1xf32> to vector<64x256xf32>
    %48 = arith.addf %45, %47 : vector<64x256xf32>
    %c0_31 = arith.constant 0 : index
    %c0_32 = arith.constant 0 : index
    %49 = vector.load %arg8[%c0_31, %c0_32] : memref<64x256xf32, #tpu.memory_space<vmem>>, vector<64x256xf32>
    tpu.vector_store %arg8[%c0_31, %c0_32], %48 {strides = array<i32>} : memref<64x256xf32, #tpu.memory_space<vmem>>, vector<64x256xf32>,
    return
  }
  func.func @transform_0(%arg0: i32) -> (i32, i32) {
    %c0_i32 = arith.constant 0 : i32
    %c0_i32_0 = arith.constant 0 : i32
    %c0_i32_1 = arith.constant 0 : i32
    return %c0_i32, %c0_i32_0 : i32, i32
  }
  func.func @transform_1(%arg0: i32) -> (i32, i32) {
    %c0_i32 = arith.constant 0 : i32
    %c0_i32_0 = arith.constant 0 : i32
    %c0_i32_1 = arith.constant 0 : i32
    return %c0_i32, %c0_i32_0 : i32, i32
  }
  func.func @transform_2(%arg0: i32) -> (i32, i32) {
    %c0_i32 = arith.constant 0 : i32
    %c0_i32_0 = arith.constant 0 : i32
    %c0_i32_1 = arith.constant 0 : i32
    return %c0_i32, %c0_i32_0 : i32, i32
  }
  func.func @transform_3(%arg0: i32) -> (i32, i32) {
    %c0_i32 = arith.constant 0 : i32
    %c0_i32_0 = arith.constant 0 : i32
    %c0_i32_1 = arith.constant 0 : i32
    return %c0_i32, %c0_i32_0 : i32, i32
  }
  func.func @transform_4(%arg0: i32) -> (i32, i32) {
    %c0_i32 = arith.constant 0 : i32
    %c0_i32_0 = arith.constant 0 : i32
    %c0_i32_1 = arith.constant 0 : i32
    return %c0_i32, %c0_i32_0 : i32, i32
  }
  func.func @transform_5(%arg0: i32) -> (i32, i32) {
    %c0_i32 = arith.constant 0 : i32
    %c0_i32_0 = arith.constant 0 : i32
    %c0_i32_1 = arith.constant 0 : i32
    return %c0_i32, %c0_i32_0 : i32, i32
  }
  func.func @transform_6(%arg0: i32) -> (i32, i32) {
    %c0_i32 = arith.constant 0 : i32
    %c0_i32_0 = arith.constant 0 : i32
    %c0_i32_1 = arith.constant 0 : i32
    return %c0_i32, %c0_i32_0 : i32, i32
  }
  func.func @transform_7(%arg0: i32) -> (i32, i32) {
    %c0_i32 = arith.constant 0 : i32
    %c0_i32_0 = arith.constant 0 : i32
    %c0_i32_1 = arith.constant 0 : i32
    return %c0_i32, %c0_i32_0 : i32, i32
  }
}

</mosaic_0001>

<llo_original>
// kernel: tpu_custom_call.1
$region0: #{tpu_custom_call.1}
  #allocation0 [shape = 'u32[]', space=smem, size = 0x4, offset = 0x4, fixed_abs, tag = 'smem constant byte address 0x4 - core index']
  #allocation1 [shape = 'u32[72,128]{1,0:T(1,128)}', space=vmem, size = 0x9000, scoped, tag = 'internal scratch']
  #allocation2 [shape = 'bf16[144,384]{1,0:T(8,128)(2,1)}', space=vmem, size = 0x1b000, scoped, tag = 'scratch operand']
  %s0 = inlined_call_operand.vmem [shape: bf16[48,512], index: 0, kind: input, shape index: {}]
  %s1 = inlined_call_operand.vmem [shape: f32[32,3], index: 1, kind: input, shape index: {}]
  %s2 = inlined_call_operand.vmem [shape: bf16[32,144], index: 2, kind: input, shape index: {}]
  %s3 = inlined_call_operand.hbm [shape: bf16[32,96], index: 3, kind: input, shape index: {}]
  %s4 = inlined_call_operand.hbm [shape: bf16[32,32], index: 4, kind: input, shape index: {}]
  %s5 = inlined_call_operand.vmem [shape: bf16[64,32], index: 5, kind: input, shape index: {}]
  %s6 = inlined_call_operand.vmem [shape: f32[64,1], index: 6, kind: input, shape index: {}]
  %s7 = inlined_call_operand.hbm [shape: f32[64,256], index: 7, kind: output, shape index: {}]
  %s8 = sld [smem:[#allocation0]]
  $region46: #{tpu_custom_call.1} parent=0
    _
  %s10 = ssub.s32 1, %s8
  %s11 = scalar_select 0, %s10, %s8
  $region1: #{tpu_custom_call.1} parent=0
    #allocation3 [shape = 'u8[8192]{0}', space=vmem, size = 0x2000, scoped, tag = 'input window, operand 3, single buffered']
    #allocation4 [shape = 's32[1]{0}', space=sflag, size = 0x4, scoped, tag = 'scoped memory for tpu_custom_call.1']
    #allocation5 [shape = 's32[1]{0}', space=sflag, size = 0x4, scoped, tag = 'scoped memory for tpu_custom_call.1']
    #allocation6 [shape = 'u8[8192]{0}', space=vmem, size = 0x2000, scoped, tag = 'input window, operand 4, single buffered']
    #allocation7 [shape = 's32[1]{0}', space=sflag, size = 0x4, scoped, tag = 'scoped memory for tpu_custom_call.1']
    #allocation8 [shape = 'u8[65536]{0}', space=vmem, size = 0x10000, scoped, tag = 'output window, operand 0, single buffered']
    %12 = vsyncpa [#allocation4], 0
    %13 = vsyncpa [#allocation7], 0
    %14 = vsyncpa [#allocation5], 0
    // Predicated region
    $region2: #{tpu_custom_call.1} parent=1 // pred_check
      _
    $region3: #{tpu_custom_call.1} parent=1 // pred_check_branch
      %16 = sbr.rel (0) target = $region5
    $region4: #{tpu_custom_call.1} parent=1 // pred_region
      _
    $region5: #{tpu_custom_call.1} parent=1 // pred_fallthru
      _
    // Predicated region
    $region6: #{tpu_custom_call.1} parent=1 // pred_check
      _
    $region7: #{tpu_custom_call.1} parent=1 // pred_check_branch
      %18 = sbr.rel (0) target = $region9
    $region8: #{tpu_custom_call.1} parent=1 // pred_region
      _
    $region9: #{tpu_custom_call.1} parent=1 // pred_fallthru
      _
    // Predicated region
    $region10: #{tpu_custom_call.1} parent=1 // pred_check
      _
    $region11: #{tpu_custom_call.1} parent=1 // pred_check_branch
      %20 = sbr.rel (0) target = $region13
    $region12: #{tpu_custom_call.1} parent=1 // pred_region
      _
    $region13: #{tpu_custom_call.1} parent=1 // pred_fallthru
      _
    // Predicated region
    $region14: #{tpu_custom_call.1} parent=1 // pred_check
      _
    $region15: #{tpu_custom_call.1} parent=1 // pred_check_branch
      %22 = sbr.rel (0) target = $region17
    $region16: #{tpu_custom_call.1} parent=1 // pred_region
      %24 = vsyncadd [#allocation4], 0
      %s25 = sshll.u32 %s3, 4
      %s26 = int_to_ptr.hbm [resolvable:$true] %s25
      %s27 = sshll.u32 [#allocation3], 4
      %s28 = int_to_ptr.vmem [resolvable:$true] %s27
      %33 = dma.hbm_to_vmem [thread:$0]  %s26, 256, %s28, [#allocation4], 64, 64, 4
    $region17: #{tpu_custom_call.1} parent=1 // pred_fallthru
      _
    // Predicated region
    $region18: #{tpu_custom_call.1} parent=1 // pred_check
      _
    $region19: #{tpu_custom_call.1} parent=1 // pred_check_branch
      %35 = sbr.rel (0) target = $region21
    $region20: #{tpu_custom_call.1} parent=1 // pred_region
      %37 = vsyncadd [#allocation7], 0
      %s38 = sshll.u32 %s4, 4
      %s39 = int_to_ptr.hbm [resolvable:$true] %s38
      %s40 = sshll.u32 [#allocation6], 4
      %s41 = int_to_ptr.vmem [resolvable:$true] %s40
      %46 = dma.hbm_to_vmem [thread:$0]  %s39, 256, %s41, [#allocation7], 64, 64, 4
    $region21: #{tpu_custom_call.1} parent=1 // pred_fallthru
      _
    // Predicated region
    $region22: #{tpu_custom_call.1} parent=1 // pred_check
      _
    $region23: #{tpu_custom_call.1} parent=1 // pred_check_branch
      %48 = sbr.rel (0) target = $region25
    $region24: #{tpu_custom_call.1} parent=1 // pred_region
      _
    $region25: #{tpu_custom_call.1} parent=1 // pred_fallthru
      _
    // Predicated region
    $region26: #{tpu_custom_call.1} parent=1 // pred_check
      _
    $region27: #{tpu_custom_call.1} parent=1 // pred_check_branch
      %50 = sbr.rel (0) target = $region29
    $region28: #{tpu_custom_call.1} parent=1 // pred_region
      _
    $region29: #{tpu_custom_call.1} parent=1 // pred_fallthru
      _
    // Predicated region
    $region30: #{tpu_custom_call.1} parent=1 // pred_check
      _
    $region31: #{tpu_custom_call.1} parent=1 // pred_check_branch
      %52 = sbr.rel (0) target = $region33
    $region32: #{tpu_custom_call.1} parent=1 // pred_region
      %54 = dma.done [#allocation4], 256
    $region33: #{tpu_custom_call.1} parent=1 // pred_fallthru
      _
    // Predicated region
    $region34: #{tpu_custom_call.1} parent=1 // pred_check
      _
    $region35: #{tpu_custom_call.1} parent=1 // pred_check_branch
      %56 = sbr.rel (0) target = $region37
    $region36: #{tpu_custom_call.1} parent=1 // pred_region
      %58 = dma.done [#allocation7], 256
    $region37: #{tpu_custom_call.1} parent=1 // pred_fallthru
      _
    %v60 = vld [vmem:[%s1] sm:$0xff]
    %v61 = vld [vmem:[%s1 + $0x8] sm:$0xff]
    %v62 = vld [vmem:[%s1 + $0x10] sm:$0xff]
    %v63 = vld [vmem:[%s1 + $0x18] sm:$0xff]
    %v64 = vld [vmem:[%s0] sm:$0xff]
    %v65 = vld [vmem:[%s0 + $0x8] sm:$0xff]
    %v66 = vld [vmem:[%s0 + $0x10] sm:$0xff]
    %v67 = vld [vmem:[%s0 + $0x18] sm:$0xff]
    %v68 = vld [vmem:[%s0 + $0x20] sm:$0xff]
    %v69 = vld [vmem:[%s0 + $0x28] sm:$0xff]
    %v70 = vld [vmem:[%s0 + $0x30] sm:$0xff]
    %v71 = vld [vmem:[%s0 + $0x38] sm:$0xff]
    %v72 = vld [vmem:[%s0 + $0x40] sm:$0xff]
    %v73 = vld [vmem:[%s0 + $0x48] sm:$0xff]
    %v74 = vld [vmem:[%s0 + $0x50] sm:$0xff]
    %v75 = vld [vmem:[%s0 + $0x58] sm:$0xff]
    %76 = vst [vmem:[#allocation2] sm:$0xff] %v64
    %77 = vst [vmem:[#allocation2 + $0x8] sm:$0xf] %v65
    %78 = vst [vmem:[#allocation2 + $0xc] sm:$0xff] %v66
    %79 = vst [vmem:[#allocation2 + $0x14] sm:$0xf] %v67
    %80 = vst [vmem:[#allocation2 + $0x18] sm:$0xff] %v68
    %81 = vst [vmem:[#allocation2 + $0x20] sm:$0xf] %v69
    %82 = vst [vmem:[#allocation2 + $0x24] sm:$0xff] %v70
    %83 = vst [vmem:[#allocation2 + $0x2c] sm:$0xf] %v71
    %84 = vst [vmem:[#allocation2 + $0x30] sm:$0xff] %v72
    %85 = vst [vmem:[#allocation2 + $0x38] sm:$0xf] %v73
    %86 = vst [vmem:[#allocation2 + $0x3c] sm:$0xff] %v74
    %87 = vst [vmem:[#allocation2 + $0x44] sm:$0xf] %v75
    %100 = vrot.lane.b32.xlu0 %v64, 127
    %v101 = vpop.permute.xlu0 %100
    %102 = vrot.lane.b32.xlu0 %v65, 127
    %v103 = vpop.permute.xlu0 %102
    %104 = vrot.lane.b32.xlu0 %v66, 127
    %v105 = vpop.permute.xlu0 %104
    %106 = vrot.lane.b32.xlu0 %v67, 127
    %v107 = vpop.permute.xlu0 %106
    %108 = vrot.lane.b32.xlu0 %v68, 127
    %v109 = vpop.permute.xlu0 %108
    %110 = vrot.lane.b32.xlu0 %v69, 127
    %v111 = vpop.permute.xlu0 %110
    %112 = vrot.lane.b32.xlu0 %v70, 127
    %v113 = vpop.permute.xlu0 %112
    %114 = vrot.lane.b32.xlu0 %v71, 127
    %v115 = vpop.permute.xlu0 %114
    %116 = vrot.lane.b32.xlu0 %v72, 127
    %v117 = vpop.permute.xlu0 %116
    %118 = vrot.lane.b32.xlu0 %v73, 127
    %v119 = vpop.permute.xlu0 %118
    %120 = vrot.lane.b32.xlu0 %v74, 127
    %v121 = vpop.permute.xlu0 %120
    %122 = vrot.lane.b32.xlu0 %v75, 127
    %v123 = vpop.permute.xlu0 %122
    %v124 = vrot.slane %v101, 4
    %v125 = vrot.slane %v103, 4
    %v126 = vrot.slane %v105, 4
    %v127 = vrot.slane %v107, 4
    %v128 = vrot.slane %v109, 4
    %v129 = vrot.slane %v111, 4
    %v130 = vrot.slane %v113, 4
    %v131 = vrot.slane %v115, 4
    %v132 = vrot.slane %v117, 4
    %v133 = vrot.slane %v119, 4
    %v134 = vrot.slane %v121, 4
    %v135 = vrot.slane %v123, 4
    %vm136 = vcmask 1043456
    %v137 = vsel %vm136, %v124, %v125
    %vm138 = vcmask 1039360
    %v139 = vsel %vm138, %v101, %v137
    %v140 = vsel %vm138, %v103, %v125
    %v141 = vsel %vm136, %v126, %v127
    %v142 = vsel %vm138, %v105, %v141
    %v143 = vsel %vm138, %v107, %v127
    %v144 = vsel %vm136, %v128, %v129
    %v145 = vsel %vm138, %v109, %v144
    %v146 = vsel %vm138, %v111, %v129
    %v147 = vsel %vm136, %v130, %v131
    %v148 = vsel %vm138, %v113, %v147
    %v149 = vsel %vm138, %v115, %v131
    %v150 = vsel %vm136, %v132, %v133
    %v151 = vsel %vm138, %v117, %v150
    %v152 = vsel %vm138, %v119, %v133
    %v153 = vsel %vm136, %v134, %v135
    %v154 = vsel %vm138, %v121, %v153
    %v155 = vsel %vm138, %v123, %v135
    %168 = vst [vmem:[#allocation2 + $0x48] sm:$0xff] %v139
    %169 = vst [vmem:[#allocation2 + $0x50] sm:$0xf] %v140
    %170 = vst [vmem:[#allocation2 + $0x54] sm:$0xff] %v142
    %171 = vst [vmem:[#allocation2 + $0x5c] sm:$0xf] %v143
    %172 = vst [vmem:[#allocation2 + $0x60] sm:$0xff] %v145
    %173 = vst [vmem:[#allocation2 + $0x68] sm:$0xf] %v146
    %174 = vst [vmem:[#allocation2 + $0x6c] sm:$0xff] %v148
    %175 = vst [vmem:[#allocation2 + $0x74] sm:$0xf] %v149
    %176 = vst [vmem:[#allocation2 + $0x78] sm:$0xff] %v151
    %177 = vst [vmem:[#allocation2 + $0x80] sm:$0xf] %v152
    %178 = vst [vmem:[#allocation2 + $0x84] sm:$0xff] %v154
    %179 = vst [vmem:[#allocation2 + $0x8c] sm:$0xf] %v155
    %180 = vrot.lane.b32.xlu0 %v64, 126
    %v181 = vpop.permute.xlu0 %180
    %182 = vrot.lane.b32.xlu0 %v65, 126
    %v183 = vpop.permute.xlu0 %182
    %184 = vrot.lane.b32.xlu0 %v66, 126
    %v185 = vpop.permute.xlu0 %184
    %186 = vrot.lane.b32.xlu0 %v67, 126
    %v187 = vpop.permute.xlu0 %186
    %188 = vrot.lane.b32.xlu0 %v68, 126
    %v189 = vpop.permute.xlu0 %188
    %190 = vrot.lane.b32.xlu0 %v69, 126
    %v191 = vpop.permute.xlu0 %190
    %192 = vrot.lane.b32.xlu0 %v70, 126
    %v193 = vpop.permute.xlu0 %192
    %194 = vrot.lane.b32.xlu0 %v71, 126
    %v195 = vpop.permute.xlu0 %194
    %196 = vrot.lane.b32.xlu0 %v72, 126
    %v197 = vpop.permute.xlu0 %196
    %198 = vrot.lane.b32.xlu0 %v73, 126
    %v199 = vpop.permute.xlu0 %198
    %200 = vrot.lane.b32.xlu0 %v74, 126
    %v201 = vpop.permute.xlu0 %200
    %202 = vrot.lane.b32.xlu0 %v75, 126
    %v203 = vpop.permute.xlu0 %202
    %v204 = vrot.slane %v181, 4
    %v205 = vrot.slane %v183, 4
    %v206 = vrot.slane %v185, 4
    %v207 = vrot.slane %v187, 4
    %v208 = vrot.slane %v189, 4
    %v209 = vrot.slane %v191, 4
    %v210 = vrot.slane %v193, 4
    %v211 = vrot.slane %v195, 4
    %v212 = vrot.slane %v197, 4
    %v213 = vrot.slane %v199, 4
    %v214 = vrot.slane %v201, 4
    %v215 = vrot.slane %v203, 4
    %v216 = vsel %vm136, %v204, %v205
    %vm217 = vcmask 1031168
    %v218 = vsel %vm217, %v181, %v216
    %v219 = vsel %vm217, %v183, %v205
    %v220 = vsel %vm136, %v206, %v207
    %v221 = vsel %vm217, %v185, %v220
    %v222 = vsel %vm217, %v187, %v207
    %v223 = vsel %vm136, %v208, %v209
    %v224 = vsel %vm217, %v189, %v223
    %v225 = vsel %vm217, %v191, %v209
    %v226 = vsel %vm136, %v210, %v211
    %v227 = vsel %vm217, %v193, %v226
    %v228 = vsel %vm217, %v195, %v211
    %v229 = vsel %vm136, %v212, %v213
    %v230 = vsel %vm217, %v197, %v229
    %v231 = vsel %vm217, %v199, %v213
    %v232 = vsel %vm136, %v214, %v215
    %v233 = vsel %vm217, %v201, %v232
    %v234 = vsel %vm217, %v203, %v215
    %247 = vst [vmem:[#allocation2 + $0x90] sm:$0xff] %v218
    %248 = vst [vmem:[#allocation2 + $0x98] sm:$0xf] %v219
    %249 = vst [vmem:[#allocation2 + $0x9c] sm:$0xff] %v221
    %250 = vst [vmem:[#allocation2 + $0xa4] sm:$0xf] %v222
    %251 = vst [vmem:[#allocation2 + $0xa8] sm:$0xff] %v224
    %252 = vst [vmem:[#allocation2 + $0xb0] sm:$0xf] %v225
    %253 = vst [vmem:[#allocation2 + $0xb4] sm:$0xff] %v227
    %254 = vst [vmem:[#allocation2 + $0xbc] sm:$0xf] %v228
    %255 = vst [vmem:[#allocation2 + $0xc0] sm:$0xff] %v230
    %256 = vst [vmem:[#allocation2 + $0xc8] sm:$0xf] %v231
    %257 = vst [vmem:[#allocation2 + $0xcc] sm:$0xff] %v233
    %258 = vst [vmem:[#allocation2 + $0xd4] sm:$0xf] %v234
    %v259 = vld [vmem:[%s2] sm:$0xff]
    %v260 = vld [vmem:[%s2 + $0x8] sm:$0xff]
    %v261 = vld [vmem:[%s2 + $0x10] sm:$0xff]
    %v262 = vld [vmem:[%s2 + $0x18] sm:$0xff]
    %v263 = vld [vmem:[#allocation2] sm:$0xff]
    %v264 = vld [vmem:[#allocation2 + $0x8] sm:$0xf]
    %v265 = vld [vmem:[#allocation2 + $0xc] sm:$0xff]
    %v266 = vld [vmem:[#allocation2 + $0x14] sm:$0xf]
    %v267 = vld [vmem:[#allocation2 + $0x18] sm:$0xff]
    %v268 = vld [vmem:[#allocation2 + $0x20] sm:$0xf]
    %v269 = vld [vmem:[#allocation2 + $0x24] sm:$0xff]
    %v270 = vld [vmem:[#allocation2 + $0x2c] sm:$0xf]
    %v271 = vld [vmem:[#allocation2 + $0x30] sm:$0xff]
    %v272 = vld [vmem:[#allocation2 + $0x38] sm:$0xf]
    %v273 = vld [vmem:[#allocation2 + $0x3c] sm:$0xff]
    %v274 = vld [vmem:[#allocation2 + $0x44] sm:$0xf]
    %v275 = vld [vmem:[#allocation2 + $0x48] sm:$0xff]
    %v276 = vld [vmem:[#allocation2 + $0x50] sm:$0xf]
    %v277 = vld [vmem:[#allocation2 + $0x54] sm:$0xff]
    %v278 = vld [vmem:[#allocation2 + $0x5c] sm:$0xf]
    %v279 = vld [vmem:[#allocation2 + $0x60] sm:$0xff]
    %v280 = vld [vmem:[#allocation2 + $0x68] sm:$0xf]
    %v281 = vld [vmem:[#allocation2 + $0x6c] sm:$0xff]
    %v282 = vld [vmem:[#allocation2 + $0x74] sm:$0xf]
    %v283 = vld [vmem:[#allocation2 + $0x78] sm:$0xff]
    %v284 = vld [vmem:[#allocation2 + $0x80] sm:$0xf]
    %v285 = vld [vmem:[#allocation2 + $0x84] sm:$0xff]
    %v286 = vld [vmem:[#allocation2 + $0x8c] sm:$0xf]
    %v287 = vld [vmem:[#allocation2 + $0x90] sm:$0xff]
    %v288 = vld [vmem:[#allocation2 + $0x98] sm:$0xf]
    %v289 = vld [vmem:[#allocation2 + $0x9c] sm:$0xff]
    %v290 = vld [vmem:[#allocation2 + $0xa4] sm:$0xf]
    %v291 = vld [vmem:[#allocation2 + $0xa8] sm:$0xff]
    %v292 = vld [vmem:[#allocation2 + $0xb0] sm:$0xf]
    %v293 = vld [vmem:[#allocation2 + $0xb4] sm:$0xff]
    %v294 = vld [vmem:[#allocation2 + $0xbc] sm:$0xf]
    %v295 = vld [vmem:[#allocation2 + $0xc0] sm:$0xff]
    %v296 = vld [vmem:[#allocation2 + $0xc8] sm:$0xf]
    %v297 = vld [vmem:[#allocation2 + $0xcc] sm:$0xff]
    %v298 = vld [vmem:[#allocation2 + $0xd4] sm:$0xf]
    %300 = vset.pattern.permute.xlu0 0
    %301 = vperm.xlu0 %300, %v60
    %v302 = vpop.permute.xlu0 %301
    %305 = vset.pattern.permute.xlu0 0
    %306 = vperm.xlu0 %305, %v61
    %v307 = vpop.permute.xlu0 %306
    %310 = vset.pattern.permute.xlu0 0
    %311 = vperm.xlu0 %310, %v62
    %v312 = vpop.permute.xlu0 %311
    %315 = vset.pattern.permute.xlu0 0
    %316 = vperm.xlu0 %315, %v63
    %v317 = vpop.permute.xlu0 %316
    %v323 = vunpack.c.l.b16 %v259
    %v324 = vunpack.c.h.b16 %v259
    %v325 = vunpack.c.l.b16 %v260
    %v326 = vunpack.c.h.b16 %v260
    %v327 = vunpack.c.l.b16 %v261
    %v328 = vunpack.c.h.b16 %v261
    %v329 = vunpack.c.l.b16 %v262
    %v330 = vunpack.c.h.b16 %v262
    %v331 = vpack.c.b16 %v325, %v323
    %v332 = vpack.c.b16 %v326, %v324
    %v333 = vpack.c.b16 %v329, %v327
    %v334 = vpack.c.b16 %v330, %v328
    %v373 = vunpack.c.l.b16 %v263
    %v374 = vunpack.c.h.b16 %v263
    %v375 = vunpack.c.l.b16 %v264
    %v376 = vunpack.c.l.b16 %v265
    %v377 = vunpack.c.h.b16 %v265
    %v378 = vunpack.c.l.b16 %v266
    %v379 = vunpack.c.l.b16 %v267
    %v380 = vunpack.c.h.b16 %v267
    %v381 = vunpack.c.l.b16 %v268
    %v382 = vunpack.c.l.b16 %v269
    %v383 = vunpack.c.h.b16 %v269
    %v384 = vunpack.c.l.b16 %v270
    %v385 = vunpack.c.l.b16 %v271
    %v386 = vunpack.c.h.b16 %v271
    %v387 = vunpack.c.l.b16 %v272
    %v388 = vunpack.c.l.b16 %v273
    %v389 = vunpack.c.h.b16 %v273
    %v390 = vunpack.c.l.b16 %v274
    %v391 = vunpack.c.l.b16 %v275
    %v392 = vunpack.c.h.b16 %v275
    %v393 = vunpack.c.l.b16 %v276
    %v394 = vunpack.c.l.b16 %v277
    %v395 = vunpack.c.h.b16 %v277
    %v396 = vunpack.c.l.b16 %v278
    %v397 = vunpack.c.l.b16 %v279
    %v398 = vunpack.c.h.b16 %v279
    %v399 = vunpack.c.l.b16 %v280
    %v400 = vunpack.c.l.b16 %v281
    %v401 = vunpack.c.h.b16 %v281
    %v402 = vunpack.c.l.b16 %v282
    %v403 = vunpack.c.l.b16 %v283
    %v404 = vunpack.c.h.b16 %v283
    %v405 = vunpack.c.l.b16 %v284
    %v406 = vunpack.c.l.b16 %v285
    %v407 = vunpack.c.h.b16 %v285
    %v408 = vunpack.c.l.b16 %v286
    %v409 = vunpack.c.l.b16 %v287
    %v410 = vunpack.c.h.b16 %v287
    %v411 = vunpack.c.l.b16 %v288
    %v412 = vunpack.c.l.b16 %v289
    %v413 = vunpack.c.h.b16 %v289
    %v414 = vunpack.c.l.b16 %v290
    %v415 = vunpack.c.l.b16 %v291
    %v416 = vunpack.c.h.b16 %v291
    %v417 = vunpack.c.l.b16 %v292
    %v418 = vunpack.c.l.b16 %v293
    %v419 = vunpack.c.h.b16 %v293
    %v420 = vunpack.c.l.b16 %v294
    %v421 = vunpack.c.l.b16 %v295
    %v422 = vunpack.c.h.b16 %v295
    %v423 = vunpack.c.l.b16 %v296
    %v424 = vunpack.c.l.b16 %v297
    %v425 = vunpack.c.h.b16 %v297
    %v426 = vunpack.c.l.b16 %v298
    %v427 = vpack.c.b16 %v376, %v373
    %v428 = vpack.c.b16 %v377, %v374
    %v429 = vpack.c.b16 %v378, %v375
    %v430 = vpack.c.b16 %v382, %v379
    %v431 = vpack.c.b16 %v383, %v380
    %v432 = vpack.c.b16 %v384, %v381
    %v433 = vpack.c.b16 %v388, %v385
    %v434 = vpack.c.b16 %v389, %v386
    %v435 = vpack.c.b16 %v390, %v387
    %v436 = vpack.c.b16 %v394, %v391
    %v437 = vpack.c.b16 %v395, %v392
    %v438 = vpack.c.b16 %v396, %v393
    %v439 = vpack.c.b16 %v400, %v397
    %v440 = vpack.c.b16 %v401, %v398
    %v441 = vpack.c.b16 %v402, %v399
    %v442 = vpack.c.b16 %v406, %v403
    %v443 = vpack.c.b16 %v407, %v404
    %v444 = vpack.c.b16 %v408, %v405
    %v445 = vpack.c.b16 %v412, %v409
    %v446 = vpack.c.b16 %v413, %v410
    %v447 = vpack.c.b16 %v414, %v411
    %v448 = vpack.c.b16 %v418, %v415
    %v449 = vpack.c.b16 %v419, %v416
    %v450 = vpack.c.b16 %v420, %v417
    %v451 = vpack.c.b16 %v424, %v421
    %v452 = vpack.c.b16 %v425, %v422
    %v453 = vpack.c.b16 %v426, %v423
    %vm481 = vcmask 130048
    %v483 = vsel %vm481, %v332, 0
    %v486 = vsel %vm481, %v334, 0
    %488 = vmatpush.bf16.msra.mxu0 %v448
    %489 = vmatpush.bf16.msra.mxu0 %v445
    %490 = vmatpush.bf16.msra.mxu0 %v442
    %491 = vmatpush.bf16.msra.mxu0 %v439
    %492 = vmatpush.bf16.msra.mxu0 %v436
    %493 = vmatpush.bf16.msra.mxu0 %v433
    %494 = vmatpush.bf16.msra.mxu0 %v430
    %495 = vmatpush.bf16.msra.mxu0 %v427
    %496 = vmatmul.bf16.gmra.mxu0 %v331
    %v497 = vpop.f32.mrf.mxu0
    %v498 = vadd.f32 %v302, %v497
    %v499 = vpop.f32.mrf.mxu0
    %v500 = vadd.f32 %v307, %v499
    %501 = vmatmul.bf16.gmra.mxu0 %v333
    %v502 = vpop.f32.mrf.mxu0
    %v503 = vadd.f32 %v312, %v502
    %v504 = vpop.f32.mrf.mxu0
    %v505 = vadd.f32 %v317, %v504
    %506 = vdwg.mxu0
    %507 = vmatpush.bf16.msra.mxu0 0
    %508 = vmatpush.bf16.msra.mxu0 0
    %509 = vmatpush.bf16.msra.mxu0 0
    %510 = vmatpush.bf16.msra.mxu0 0
    %511 = vmatpush.bf16.msra.mxu0 0
    %512 = vmatpush.bf16.msra.mxu0 0
    %513 = vmatpush.bf16.msra.mxu0 0
    %514 = vmatpush.bf16.msra.mxu0 %v451
    %515 = vmatmul.bf16.gmra.mxu0 %v483
    %v516 = vpop.f32.mrf.mxu0
    %v517 = vadd.f32 %v498, %v516
    %v518 = vpop.f32.mrf.mxu0
    %v519 = vadd.f32 %v500, %v518
    %520 = vmatmul.bf16.gmra.mxu0 %v486
    %v521 = vpop.f32.mrf.mxu0
    %v522 = vadd.f32 %v503, %v521
    %v523 = vpop.f32.mrf.mxu0
    %v524 = vadd.f32 %v505, %v523
    %525 = vdwg.mxu0
    %526 = vmatpush.bf16.msra.mxu0 %v449
    %527 = vmatpush.bf16.msra.mxu0 %v446
    %528 = vmatpush.bf16.msra.mxu0 %v443
    %529 = vmatpush.bf16.msra.mxu0 %v440
    %530 = vmatpush.bf16.msra.mxu0 %v437
    %531 = vmatpush.bf16.msra.mxu0 %v434
    %532 = vmatpush.bf16.msra.mxu0 %v431
    %533 = vmatpush.bf16.msra.mxu0 %v428
    %534 = vmatmul.bf16.gmra.mxu0 %v331
    %v535 = vpop.f32.mrf.mxu0
    %v536 = vadd.f32 %v302, %v535
    %v537 = vpop.f32.mrf.mxu0
    %v538 = vadd.f32 %v307, %v537
    %539 = vmatmul.bf16.gmra.mxu0 %v333
    %v540 = vpop.f32.mrf.mxu0
    %v541 = vadd.f32 %v312, %v540
    %v542 = vpop.f32.mrf.mxu0
    %v543 = vadd.f32 %v317, %v542
    %544 = vdwg.mxu0
    %545 = vmatpush.bf16.msra.mxu0 0
    %546 = vmatpush.bf16.msra.mxu0 0
    %547 = vmatpush.bf16.msra.mxu0 0
    %548 = vmatpush.bf16.msra.mxu0 0
    %549 = vmatpush.bf16.msra.mxu0 0
    %550 = vmatpush.bf16.msra.mxu0 0
    %551 = vmatpush.bf16.msra.mxu0 0
    %552 = vmatpush.bf16.msra.mxu0 %v452
    %553 = vmatmul.bf16.gmra.mxu0 %v483
    %v554 = vpop.f32.mrf.mxu0
    %v555 = vadd.f32 %v536, %v554
    %v556 = vpop.f32.mrf.mxu0
    %v557 = vadd.f32 %v538, %v556
    %558 = vmatmul.bf16.gmra.mxu0 %v486
    %v559 = vpop.f32.mrf.mxu0
    %v560 = vadd.f32 %v541, %v559
    %v561 = vpop.f32.mrf.mxu0
    %v562 = vadd.f32 %v543, %v561
    %563 = vdwg.mxu0
    %564 = vmatpush.bf16.msra.mxu0 %v450
    %565 = vmatpush.bf16.msra.mxu0 %v447
    %566 = vmatpush.bf16.msra.mxu0 %v444
    %567 = vmatpush.bf16.msra.mxu0 %v441
    %568 = vmatpush.bf16.msra.mxu0 %v438
    %569 = vmatpush.bf16.msra.mxu0 %v435
    %570 = vmatpush.bf16.msra.mxu0 %v432
    %571 = vmatpush.bf16.msra.mxu0 %v429
    %572 = vmatmul.bf16.gmra.mxu0 %v331
    %v573 = vpop.f32.mrf.mxu0
    %v574 = vadd.f32 %v302, %v573
    %v575 = vpop.f32.mrf.mxu0
    %v576 = vadd.f32 %v307, %v575
    %577 = vmatmul.bf16.gmra.mxu0 %v333
    %v578 = vpop.f32.mrf.mxu0
    %v579 = vadd.f32 %v312, %v578
    %v580 = vpop.f32.mrf.mxu0
    %v581 = vadd.f32 %v317, %v580
    %582 = vdwg.mxu0
    %583 = vmatpush.bf16.msra.mxu0 0
    %584 = vmatpush.bf16.msra.mxu0 0
    %585 = vmatpush.bf16.msra.mxu0 0
    %586 = vmatpush.bf16.msra.mxu0 0
    %587 = vmatpush.bf16.msra.mxu0 0
    %588 = vmatpush.bf16.msra.mxu0 0
    %589 = vmatpush.bf16.msra.mxu0 0
    %590 = vmatpush.bf16.msra.mxu0 %v453
    %591 = vmatmul.bf16.gmra.mxu0 %v483
    %v592 = vpop.f32.mrf.mxu0
    %v593 = vadd.f32 %v574, %v592
    %v594 = vpop.f32.mrf.mxu0
    %v595 = vadd.f32 %v576, %v594
    %596 = vmatmul.bf16.gmra.mxu0 %v486
    %v597 = vpop.f32.mrf.mxu0
    %v598 = vadd.f32 %v579, %v597
    %v599 = vpop.f32.mrf.mxu0
    %v600 = vadd.f32 %v581, %v599
    %601 = vdwg.mxu0
    %v602 = vmax.f32 %v517, 0.0
    %v603 = vmax.f32 %v555, 0.0
    %v604 = vmax.f32 %v593, 0.0
    %v605 = vmax.f32 %v519, 0.0
    %v606 = vmax.f32 %v557, 0.0
    %v607 = vmax.f32 %v595, 0.0
    %v608 = vmax.f32 %v522, 0.0
    %v609 = vmax.f32 %v560, 0.0
    %v610 = vmax.f32 %v598, 0.0
    %v611 = vmax.f32 %v524, 0.0
    %v612 = vmax.f32 %v562, 0.0
    %v613 = vmax.f32 %v600, 0.0
    %v614 = vpack.c.bf16 %v603, %v602
    %v615 = vpack.c.bf16 %v606, %v605
    %v616 = vpack.c.bf16 %v609, %v608
    %v617 = vpack.c.bf16 %v612, %v611
    %618 = vst [vmem:[#allocation2] sm:$0xff] %v614
    %619 = vst [vmem:[#allocation2 + $0xc] sm:$0xff] %v615
    %620 = vst [vmem:[#allocation2 + $0x18] sm:$0xff] %v616
    %621 = vst [vmem:[#allocation2 + $0x24] sm:$0xff] %v617
    %v622 = vpack.c.bf16 %v604, %v604
    %v623 = vpack.c.bf16 %v607, %v607
    %v624 = vpack.c.bf16 %v610, %v610
    %v625 = vpack.c.bf16 %v613, %v613
    %634 = vrot.lane.b32.xlu0 %v614, 125
    %v635 = vpop.permute.xlu0 %634
    %636 = vrot.lane.b32.xlu0 %v622, 125
    %v637 = vpop.permute.xlu0 %636
    %638 = vrot.lane.b32.xlu0 %v615, 125
    %v639 = vpop.permute.xlu0 %638
    %640 = vrot.lane.b32.xlu0 %v623, 125
    %v641 = vpop.permute.xlu0 %640
    %642 = vrot.lane.b32.xlu0 %v616, 125
    %v643 = vpop.permute.xlu0 %642
    %644 = vrot.lane.b32.xlu0 %v624, 125
    %v645 = vpop.permute.xlu0 %644
    %646 = vrot.lane.b32.xlu0 %v617, 125
    %v647 = vpop.permute.xlu0 %646
    %648 = vrot.lane.b32.xlu0 %v625, 125
    %v649 = vpop.permute.xlu0 %648
    %v650 = vrot.slane %v635, 4
    %v651 = vrot.slane %v637, 4
    %v652 = vrot.slane %v639, 4
    %v653 = vrot.slane %v641, 4
    %v654 = vrot.slane %v643, 4
    %v655 = vrot.slane %v645, 4
    %v656 = vrot.slane %v647, 4
    %v657 = vrot.slane %v649, 4
    %v658 = vsel %vm136, %v650, %v651
    %vm659 = vcmask 1022976
    %v660 = vsel %vm659, %v635, %v658
    %v661 = vsel %vm136, %v652, %v653
    %v662 = vsel %vm659, %v639, %v661
    %v663 = vsel %vm136, %v654, %v655
    %v664 = vsel %vm659, %v643, %v663
    %v665 = vsel %vm136, %v656, %v657
    %v666 = vsel %vm659, %v647, %v665
    %671 = vst [vmem:[#allocation2 + $0x30] sm:$0xff] %v660
    %672 = vst [vmem:[#allocation2 + $0x3c] sm:$0xff] %v662
    %673 = vst [vmem:[#allocation2 + $0x48] sm:$0xff] %v664
    %674 = vst [vmem:[#allocation2 + $0x54] sm:$0xff] %v666
    %675 = vrot.lane.b32.xlu0 %v614, 122
    %v676 = vpop.permute.xlu0 %675
    %677 = vrot.lane.b32.xlu0 %v622, 122
    %v678 = vpop.permute.xlu0 %677
    %679 = vrot.lane.b32.xlu0 %v615, 122
    %v680 = vpop.permute.xlu0 %679
    %681 = vrot.lane.b32.xlu0 %v623, 122
    %v682 = vpop.permute.xlu0 %681
    %683 = vrot.lane.b32.xlu0 %v616, 122
    %v684 = vpop.permute.xlu0 %683
    %685 = vrot.lane.b32.xlu0 %v624, 122
    %v686 = vpop.permute.xlu0 %685
    %687 = vrot.lane.b32.xlu0 %v617, 122
    %v688 = vpop.permute.xlu0 %687
    %689 = vrot.lane.b32.xlu0 %v625, 122
    %v690 = vpop.permute.xlu0 %689
    %v691 = vrot.slane %v676, 4
    %v692 = vrot.slane %v678, 4
    %v693 = vrot.slane %v680, 4
    %v694 = vrot.slane %v682, 4
    %v695 = vrot.slane %v684, 4
    %v696 = vrot.slane %v686, 4
    %v697 = vrot.slane %v688, 4
    %v698 = vrot.slane %v690, 4
    %v699 = vsel %vm136, %v691, %v692
    %vm700 = vcmask 998400
    %v701 = vsel %vm700, %v676, %v699
    %v702 = vsel %vm136, %v693, %v694
    %v703 = vsel %vm700, %v680, %v702
    %v704 = vsel %vm136, %v695, %v696
    %v705 = vsel %vm700, %v684, %v704
    %v706 = vsel %vm136, %v697, %v698
    %v707 = vsel %vm700, %v688, %v706
    %712 = vst [vmem:[#allocation2 + $0x60] sm:$0xff] %v701
    %713 = vst [vmem:[#allocation2 + $0x6c] sm:$0xff] %v703
    %714 = vst [vmem:[#allocation2 + $0x78] sm:$0xff] %v705
    %715 = vst [vmem:[#allocation2 + $0x84] sm:$0xff] %v707
    %v716 = vld [vmem:[#allocation3] sm:$0xf]
    %v717 = vld [vmem:[#allocation3 + $0x4] sm:$0xf]
    %v718 = vld [vmem:[#allocation3 + $0x8] sm:$0xf]
    %v719 = vld [vmem:[#allocation3 + $0xc] sm:$0xf]
    %v720 = vld [vmem:[#allocation2] sm:$0xff]
    %v721 = vld [vmem:[#allocation2 + $0xc] sm:$0xff]
    %v722 = vld [vmem:[#allocation2 + $0x18] sm:$0xff]
    %v723 = vld [vmem:[#allocation2 + $0x24] sm:$0xff]
    %v724 = vld [vmem:[#allocation2 + $0x30] sm:$0xff]
    %v725 = vld [vmem:[#allocation2 + $0x3c] sm:$0xff]
    %v726 = vld [vmem:[#allocation2 + $0x48] sm:$0xff]
    %v727 = vld [vmem:[#allocation2 + $0x54] sm:$0xff]
    %v728 = vld [vmem:[#allocation2 + $0x60] sm:$0xff]
    %v729 = vld [vmem:[#allocation2 + $0x6c] sm:$0xff]
    %v730 = vld [vmem:[#allocation2 + $0x78] sm:$0xff]
    %v731 = vld [vmem:[#allocation2 + $0x84] sm:$0xff]
    %732 = vset.pattern.permute.xlu0 1
    %733 = vperm.xlu0 %732, %v60
    %v734 = vpop.permute.xlu0 %733
    %736 = vset.pattern.permute.xlu0 1
    %737 = vperm.xlu0 %736, %v61
    %v738 = vpop.permute.xlu0 %737
    %740 = vset.pattern.permute.xlu0 1
    %741 = vperm.xlu0 %740, %v62
    %v742 = vpop.permute.xlu0 %741
    %744 = vset.pattern.permute.xlu0 1
    %745 = vperm.xlu0 %744, %v63
    %v746 = vpop.permute.xlu0 %745
    %v752 = vunpack.c.l.b16 %v716
    %v753 = vunpack.c.l.b16 %v717
    %v754 = vunpack.c.l.b16 %v718
    %v755 = vunpack.c.l.b16 %v719
    %v756 = vpack.c.b16 %v753, %v752
    %v757 = vpack.c.b16 %v755, %v754
    %v770 = vunpack.c.l.b16 %v720
    %v771 = vunpack.c.h.b16 %v720
    %v772 = vunpack.c.l.b16 %v721
    %v773 = vunpack.c.h.b16 %v721
    %v774 = vunpack.c.l.b16 %v722
    %v775 = vunpack.c.h.b16 %v722
    %v776 = vunpack.c.l.b16 %v723
    %v777 = vunpack.c.h.b16 %v723
    %v778 = vunpack.c.l.b16 %v724
    %v779 = vunpack.c.h.b16 %v724
    %v780 = vunpack.c.l.b16 %v725
    %v781 = vunpack.c.h.b16 %v725
    %v782 = vunpack.c.l.b16 %v726
    %v783 = vunpack.c.h.b16 %v726
    %v784 = vunpack.c.l.b16 %v727
    %v785 = vunpack.c.h.b16 %v727
    %v786 = vunpack.c.l.b16 %v728
    %v787 = vunpack.c.h.b16 %v728
    %v788 = vunpack.c.l.b16 %v729
    %v789 = vunpack.c.h.b16 %v729
    %v790 = vunpack.c.l.b16 %v730
    %v791 = vunpack.c.h.b16 %v730
    %v792 = vunpack.c.l.b16 %v731
    %v793 = vunpack.c.h.b16 %v731
    %v794 = vpack.c.b16 %v772, %v770
    %v795 = vpack.c.b16 %v773, %v771
    %v796 = vpack.c.b16 %v776, %v774
    %v797 = vpack.c.b16 %v777, %v775
    %v798 = vpack.c.b16 %v780, %v778
    %v799 = vpack.c.b16 %v781, %v779
    %v800 = vpack.c.b16 %v784, %v782
    %v801 = vpack.c.b16 %v785, %v783
    %v802 = vpack.c.b16 %v788, %v786
    %v803 = vpack.c.b16 %v789, %v787
    %v804 = vpack.c.b16 %v792, %v790
    %v805 = vpack.c.b16 %v793, %v791
    %vm818 = vcmask 785408
    %v820 = vsel %vm818, %v756, 0
    %v823 = vsel %vm818, %v757, 0
    %825 = vmatpush.bf16.msra.mxu0 0
    %826 = vmatpush.bf16.msra.mxu0 0
    %827 = vmatpush.bf16.msra.mxu0 %v804
    %828 = vmatpush.bf16.msra.mxu0 %v802
    %829 = vmatpush.bf16.msra.mxu0 %v800
    %830 = vmatpush.bf16.msra.mxu0 %v798
    %831 = vmatpush.bf16.msra.mxu0 %v796
    %832 = vmatpush.bf16.msra.mxu0 %v794
    %833 = vmatmul.bf16.gmra.mxu0 %v820
    %v834 = vpop.f32.mrf.mxu0
    %v835 = vadd.f32 %v734, %v834
    %v836 = vpop.f32.mrf.mxu0
    %v837 = vadd.f32 %v738, %v836
    %838 = vmatmul.bf16.gmra.mxu0 %v823
    %v839 = vpop.f32.mrf.mxu0
    %v840 = vadd.f32 %v742, %v839
    %v841 = vpop.f32.mrf.mxu0
    %v842 = vadd.f32 %v746, %v841
    %843 = vdwg.mxu0
    %844 = vmatpush.bf16.msra.mxu0 0
    %845 = vmatpush.bf16.msra.mxu0 0
    %846 = vmatpush.bf16.msra.mxu0 %v805
    %847 = vmatpush.bf16.msra.mxu0 %v803
    %848 = vmatpush.bf16.msra.mxu0 %v801
    %849 = vmatpush.bf16.msra.mxu0 %v799
    %850 = vmatpush.bf16.msra.mxu0 %v797
    %851 = vmatpush.bf16.msra.mxu0 %v795
    %852 = vmatmul.bf16.gmra.mxu0 %v820
    %v853 = vpop.f32.mrf.mxu0
    %v854 = vadd.f32 %v734, %v853
    %v855 = vpop.f32.mrf.mxu0
    %v856 = vadd.f32 %v738, %v855
    %857 = vmatmul.bf16.gmra.mxu0 %v823
    %v858 = vpop.f32.mrf.mxu0
    %v859 = vadd.f32 %v742, %v858
    %v860 = vpop.f32.mrf.mxu0
    %v861 = vadd.f32 %v746, %v860
    %862 = vdwg.mxu0
    %v863 = vmax.f32 %v835, 0.0
    %v864 = vmax.f32 %v854, 0.0
    %v865 = vmax.f32 %v837, 0.0
    %v866 = vmax.f32 %v856, 0.0
    %v867 = vmax.f32 %v840, 0.0
    %v868 = vmax.f32 %v859, 0.0
    %v869 = vmax.f32 %v842, 0.0
    %v870 = vmax.f32 %v861, 0.0
    %v871 = vld [vmem:[#allocation6] sm:$0xf]
    %v872 = vld [vmem:[#allocation6 + $0x4] sm:$0xf]
    %v873 = vld [vmem:[#allocation6 + $0x8] sm:$0xf]
    %v874 = vld [vmem:[#allocation6 + $0xc] sm:$0xf]
    %v875 = vpack.c.bf16 %v865, %v863
    %v876 = vpack.c.bf16 %v866, %v864
    %v877 = vpack.c.bf16 %v869, %v867
    %v878 = vpack.c.bf16 %v870, %v868
    %879 = vset.pattern.permute.xlu0 2
    %880 = vperm.xlu0 %879, %v60
    %v881 = vpop.permute.xlu0 %880
    %883 = vset.pattern.permute.xlu0 2
    %884 = vperm.xlu0 %883, %v61
    %v885 = vpop.permute.xlu0 %884
    %887 = vset.pattern.permute.xlu0 2
    %888 = vperm.xlu0 %887, %v62
    %v889 = vpop.permute.xlu0 %888
    %891 = vset.pattern.permute.xlu0 2
    %892 = vperm.xlu0 %891, %v63
    %v893 = vpop.permute.xlu0 %892
    %v899 = vunpack.c.l.b16 %v871
    %v900 = vunpack.c.l.b16 %v872
    %v901 = vunpack.c.l.b16 %v873
    %v902 = vunpack.c.l.b16 %v874
    %v903 = vpack.c.b16 %v900, %v899
    %v904 = vpack.c.b16 %v902, %v901
    %vm905 = vcmask 261120
    %v907 = vsel %vm905, %v903, 0
    %v910 = vsel %vm905, %v904, 0
    %912 = vmatpush.bf16.msra.mxu0 0
    %913 = vmatpush.bf16.msra.mxu0 0
    %914 = vmatpush.bf16.msra.mxu0 0
    %915 = vmatpush.bf16.msra.mxu0 0
    %916 = vmatpush.bf16.msra.mxu0 0
    %917 = vmatpush.bf16.msra.mxu0 0
    %918 = vmatpush.bf16.msra.mxu0 %v877
    %919 = vmatpush.bf16.msra.mxu0 %v875
    %920 = vmatmul.bf16.gmra.mxu0 %v907
    %v921 = vpop.f32.mrf.mxu0
    %v922 = vadd.f32 %v881, %v921
    %v923 = vpop.f32.mrf.mxu0
    %v924 = vadd.f32 %v885, %v923
    %925 = vmatmul.bf16.gmra.mxu0 %v910
    %v926 = vpop.f32.mrf.mxu0
    %v927 = vadd.f32 %v889, %v926
    %v928 = vpop.f32.mrf.mxu0
    %v929 = vadd.f32 %v893, %v928
    %930 = vdwg.mxu0
    %931 = vmatpush.bf16.msra.mxu0 0
    %932 = vmatpush.bf16.msra.mxu0 0
    %933 = vmatpush.bf16.msra.mxu0 0
    %934 = vmatpush.bf16.msra.mxu0 0
    %935 = vmatpush.bf16.msra.mxu0 0
    %936 = vmatpush.bf16.msra.mxu0 0
    %937 = vmatpush.bf16.msra.mxu0 %v878
    %938 = vmatpush.bf16.msra.mxu0 %v876
    %939 = vmatmul.bf16.gmra.mxu0 %v907
    %v940 = vpop.f32.mrf.mxu0
    %v941 = vadd.f32 %v881, %v940
    %v942 = vpop.f32.mrf.mxu0
    %v943 = vadd.f32 %v885, %v942
    %944 = vmatmul.bf16.gmra.mxu0 %v910
    %v945 = vpop.f32.mrf.mxu0
    %v946 = vadd.f32 %v889, %v945
    %v947 = vpop.f32.mrf.mxu0
    %v948 = vadd.f32 %v893, %v947
    %949 = vdwg.mxu0
    %v950 = vmax.f32 %v922, 0.0
    %v951 = vmax.f32 %v941, 0.0
    %v952 = vmax.f32 %v924, 0.0
    %v953 = vmax.f32 %v943, 0.0
    %v954 = vmax.f32 %v927, 0.0
    %v955 = vmax.f32 %v946, 0.0
    %v956 = vmax.f32 %v929, 0.0
    %v957 = vmax.f32 %v948, 0.0
    %966 = vrot.lane.b32.xlu0 %v950, 3
    %v967 = vpop.permute.xlu0 %966
    %968 = vrot.lane.b32.xlu0 %v951, 3
    %v969 = vpop.permute.xlu0 %968
    %970 = vrot.lane.b32.xlu0 %v952, 3
    %v971 = vpop.permute.xlu0 %970
    %972 = vrot.lane.b32.xlu0 %v953, 3
    %v973 = vpop.permute.xlu0 %972
    %974 = vrot.lane.b32.xlu0 %v954, 3
    %v975 = vpop.permute.xlu0 %974
    %976 = vrot.lane.b32.xlu0 %v955, 3
    %v977 = vpop.permute.xlu0 %976
    %978 = vrot.lane.b32.xlu0 %v956, 3
    %v979 = vpop.permute.xlu0 %978
    %980 = vrot.lane.b32.xlu0 %v957, 3
    %v981 = vpop.permute.xlu0 %980
    %vm982 = vcmask 23552
    %v983 = vsel %vm982, %v967, %v969
    %v984 = vsel %vm982, %v971, %v973
    %v985 = vsel %vm982, %v975, %v977
    %v986 = vsel %vm982, %v979, %v981
    %v999 = vadd.f32 %v602, %v967
    %v1000 = vadd.f32 %v603, %v983
    %v1001 = vadd.f32 %v604, %v969
    %v1002 = vadd.f32 %v605, %v971
    %v1003 = vadd.f32 %v606, %v984
    %v1004 = vadd.f32 %v607, %v973
    %v1005 = vadd.f32 %v608, %v975
    %v1006 = vadd.f32 %v609, %v985
    %v1007 = vadd.f32 %v610, %v977
    %v1008 = vadd.f32 %v611, %v979
    %v1009 = vadd.f32 %v612, %v986
    %v1010 = vadd.f32 %v613, %v981
    %v1011 = vld [vmem:[%s5] sm:$0xf]
    %v1012 = vld [vmem:[%s5 + $0x4] sm:$0xf]
    %v1013 = vld [vmem:[%s5 + $0x8] sm:$0xf]
    %v1014 = vld [vmem:[%s5 + $0xc] sm:$0xf]
    %v1015 = vld [vmem:[%s5 + $0x10] sm:$0xf]
    %v1016 = vld [vmem:[%s5 + $0x14] sm:$0xf]
    %v1017 = vld [vmem:[%s5 + $0x18] sm:$0xf]
    %v1018 = vld [vmem:[%s5 + $0x1c] sm:$0xf]
    %v1019 = vpack.c.bf16 %v1002, %v999
    %v1020 = vpack.c.bf16 %v1003, %v1000
    %v1021 = vpack.c.bf16 %v1004, %v1001
    %v1022 = vpack.c.bf16 %v1008, %v1005
    %v1023 = vpack.c.bf16 %v1009, %v1006
    %v1024 = vpack.c.bf16 %v1010, %v1007
    %v1025 = vld [vmem:[%s6] sm:$0xff]
    %v1026 = vld [vmem:[%s6 + $0x8] sm:$0xff]
    %v1027 = vld [vmem:[%s6 + $0x10] sm:$0xff]
    %v1028 = vld [vmem:[%s6 + $0x18] sm:$0xff]
    %v1029 = vld [vmem:[%s6 + $0x20] sm:$0xff]
    %v1030 = vld [vmem:[%s6 + $0x28] sm:$0xff]
    %v1031 = vld [vmem:[%s6 + $0x30] sm:$0xff]
    %v1032 = vld [vmem:[%s6 + $0x38] sm:$0xff]
    %1034 = vset.pattern.permute.xlu0 0
    %1035 = vperm.xlu0 %1034, %v1025
    %v1036 = vpop.permute.xlu0 %1035
    %1039 = vset.pattern.permute.xlu0 0
    %1040 = vperm.xlu0 %1039, %v1026
    %v1041 = vpop.permute.xlu0 %1040
    %1044 = vset.pattern.permute.xlu0 0
    %1045 = vperm.xlu0 %1044, %v1027
    %v1046 = vpop.permute.xlu0 %1045
    %1049 = vset.pattern.permute.xlu0 0
    %1050 = vperm.xlu0 %1049, %v1028
    %v1051 = vpop.permute.xlu0 %1050
    %1054 = vset.pattern.permute.xlu0 0
    %1055 = vperm.xlu0 %1054, %v1029
    %v1056 = vpop.permute.xlu0 %1055
    %1059 = vset.pattern.permute.xlu0 0
    %1060 = vperm.xlu0 %1059, %v1030
    %v1061 = vpop.permute.xlu0 %1060
    %1064 = vset.pattern.permute.xlu0 0
    %1065 = vperm.xlu0 %1064, %v1031
    %v1066 = vpop.permute.xlu0 %1065
    %1069 = vset.pattern.permute.xlu0 0
    %1070 = vperm.xlu0 %1069, %v1032
    %v1071 = vpop.permute.xlu0 %1070
    %v1081 = vunpack.c.l.b16 %v1011
    %v1082 = vunpack.c.l.b16 %v1012
    %v1083 = vunpack.c.l.b16 %v1013
    %v1084 = vunpack.c.l.b16 %v1014
    %v1085 = vunpack.c.l.b16 %v1015
    %v1086 = vunpack.c.l.b16 %v1016
    %v1087 = vunpack.c.l.b16 %v1017
    %v1088 = vunpack.c.l.b16 %v1018
    %v1089 = vpack.c.b16 %v1082, %v1081
    %v1090 = vpack.c.b16 %v1084, %v1083
    %v1091 = vpack.c.b16 %v1086, %v1085
    %v1092 = vpack.c.b16 %v1088, %v1087
    %1099 = vrot.lane.b32.xlu0 %v1019, 125
    %v1100 = vpop.permute.xlu0 %1099
    %1101 = vrot.lane.b32.xlu0 %v1020, 125
    %v1102 = vpop.permute.xlu0 %1101
    %1103 = vrot.lane.b32.xlu0 %v1021, 125
    %v1104 = vpop.permute.xlu0 %1103
    %1105 = vrot.lane.b32.xlu0 %v1022, 125
    %v1106 = vpop.permute.xlu0 %1105
    %1107 = vrot.lane.b32.xlu0 %v1023, 125
    %v1108 = vpop.permute.xlu0 %1107
    %1109 = vrot.lane.b32.xlu0 %v1024, 125
    %v1110 = vpop.permute.xlu0 %1109
    %v1111 = vsel %vm659, %v1100, %v1102
    %v1112 = vsel %vm659, %v1102, %v1104
    %v1113 = vsel %vm659, %v1106, %v1108
    %v1114 = vsel %vm659, %v1108, %v1110
    %v1120 = vsel %vm905, %v1089, 0
    %v1123 = vsel %vm905, %v1090, 0
    %v1126 = vsel %vm905, %v1091, 0
    %v1129 = vsel %vm905, %v1092, 0
    %1131 = vmatpush.bf16.msra.mxu0 0
    %1132 = vmatpush.bf16.msra.mxu0 0
    %1133 = vmatpush.bf16.msra.mxu0 0
    %1134 = vmatpush.bf16.msra.mxu0 0
    %1135 = vmatpush.bf16.msra.mxu0 0
    %1136 = vmatpush.bf16.msra.mxu0 0
    %1137 = vmatpush.bf16.msra.mxu0 %v1113
    %1138 = vmatpush.bf16.msra.mxu0 %v1111
    %1139 = vmatmul.bf16.gmra.mxu0 %v1120
    %v1140 = vpop.f32.mrf.mxu0
    %v1141 = vadd.f32 %v1036, %v1140
    %v1142 = vpop.f32.mrf.mxu0
    %v1143 = vadd.f32 %v1041, %v1142
    %1144 = vmatmul.bf16.gmra.mxu0 %v1123
    %v1145 = vpop.f32.mrf.mxu0
    %v1146 = vadd.f32 %v1046, %v1145
    %v1147 = vpop.f32.mrf.mxu0
    %v1148 = vadd.f32 %v1051, %v1147
    %1149 = vmatmul.bf16.gmra.mxu0 %v1126
    %v1150 = vpop.f32.mrf.mxu0
    %v1151 = vadd.f32 %v1056, %v1150
    %v1152 = vpop.f32.mrf.mxu0
    %v1153 = vadd.f32 %v1061, %v1152
    %1154 = vmatmul.bf16.gmra.mxu0 %v1129
    %v1155 = vpop.f32.mrf.mxu0
    %v1156 = vadd.f32 %v1066, %v1155
    %v1157 = vpop.f32.mrf.mxu0
    %v1158 = vadd.f32 %v1071, %v1157
    %1159 = vdwg.mxu0
    %1160 = vmatpush.bf16.msra.mxu0 0
    %1161 = vmatpush.bf16.msra.mxu0 0
    %1162 = vmatpush.bf16.msra.mxu0 0
    %1163 = vmatpush.bf16.msra.mxu0 0
    %1164 = vmatpush.bf16.msra.mxu0 0
    %1165 = vmatpush.bf16.msra.mxu0 0
    %1166 = vmatpush.bf16.msra.mxu0 %v1114
    %1167 = vmatpush.bf16.msra.mxu0 %v1112
    %1168 = vmatmul.bf16.gmra.mxu0 %v1120
    %v1169 = vpop.f32.mrf.mxu0
    %v1170 = vadd.f32 %v1036, %v1169
    %v1171 = vpop.f32.mrf.mxu0
    %v1172 = vadd.f32 %v1041, %v1171
    %1173 = vmatmul.bf16.gmra.mxu0 %v1123
    %v1174 = vpop.f32.mrf.mxu0
    %v1175 = vadd.f32 %v1046, %v1174
    %v1176 = vpop.f32.mrf.mxu0
    %v1177 = vadd.f32 %v1051, %v1176
    %1178 = vmatmul.bf16.gmra.mxu0 %v1126
    %v1179 = vpop.f32.mrf.mxu0
    %v1180 = vadd.f32 %v1056, %v1179
    %v1181 = vpop.f32.mrf.mxu0
    %v1182 = vadd.f32 %v1061, %v1181
    %1183 = vmatmul.bf16.gmra.mxu0 %v1129
    %v1184 = vpop.f32.mrf.mxu0
    %v1185 = vadd.f32 %v1066, %v1184
    %v1186 = vpop.f32.mrf.mxu0
    %v1187 = vadd.f32 %v1071, %v1186
    %1188 = vdwg.mxu0
    %1189 = vst [vmem:[#allocation8] sm:$0xff] %v1141
    %1190 = vst [vmem:[#allocation8 + $0x8] sm:$0xff] %v1170
    %1191 = vst [vmem:[#allocation8 + $0x10] sm:$0xff] %v1143
    %1192 = vst [vmem:[#allocation8 + $0x18] sm:$0xff] %v1172
    %1193 = vst [vmem:[#allocation8 + $0x20] sm:$0xff] %v1146
    %1194 = vst [vmem:[#allocation8 + $0x28] sm:$0xff] %v1175
    %1195 = vst [vmem:[#allocation8 + $0x30] sm:$0xff] %v1148
    %1196 = vst [vmem:[#allocation8 + $0x38] sm:$0xff] %v1177
    %1197 = vst [vmem:[#allocation8 + $0x40] sm:$0xff] %v1151
    %1198 = vst [vmem:[#allocation8 + $0x48] sm:$0xff] %v1180
    %1199 = vst [vmem:[#allocation8 + $0x50] sm:$0xff] %v1153
    %1200 = vst [vmem:[#allocation8 + $0x58] sm:$0xff] %v1182
    %1201 = vst [vmem:[#allocation8 + $0x60] sm:$0xff] %v1156
    %1202 = vst [vmem:[#allocation8 + $0x68] sm:$0xff] %v1185
    %1203 = vst [vmem:[#allocation8 + $0x70] sm:$0xff] %v1158
    %1204 = vst [vmem:[#allocation8 + $0x78] sm:$0xff] %v1187
    // Predicated region
    $region38: #{tpu_custom_call.1} parent=1 // pred_check
      _
    $region39: #{tpu_custom_call.1} parent=1 // pred_check_branch
      %1206 = sbr.rel (0) target = $region41
    $region40: #{tpu_custom_call.1} parent=1 // pred_region
      %1208 = vsyncadd [#allocation5], 0
      %s1209 = sshll.u32 [#allocation8], 4
      %s1210 = int_to_ptr.vmem [resolvable:$true] %s1209
      %s1211 = sshll.u32 %s7, 4
      %s1212 = int_to_ptr.hbm [resolvable:$true] %s1211
      %1217 = dma.vmem_to_hbm [thread:$0]  %s1210, 2048, %s1212, [#allocation5], 256, 256, 16
    $region41: #{tpu_custom_call.1} parent=1 // pred_fallthru
      _
    // Predicated region
    $region42: #{tpu_custom_call.1} parent=1 // pred_check
      _
    $region43: #{tpu_custom_call.1} parent=1 // pred_check_branch
      %1219 = sbr.rel (0) target = $region45
    $region44: #{tpu_custom_call.1} parent=1 // pred_region
      %1221 = dma.done [#allocation5], 2048
    $region45: #{tpu_custom_call.1} parent=1 // pred_fallthru
      _
    %1222 = vsyncpa [#allocation4], 1
    %1223 = vsyncpa [#allocation7], 1
    %1224 = vsyncpa [#allocation5], 1

</llo_original>
